<compile_context>
chip_gen: v6e
topology: v6e:2x2x1
jax: 0.10.0
libtpu: 0.0.40
codegen_flags: <defaults>
</compile_context>

<pallas_src>
import jax
import jax.numpy as jnp
from jax import lax
from jax.experimental import pallas as pl
from jax.experimental.pallas import tpu as pltpu

# PyTorch layer dims: (in_features, out_features)
DIMS = [(20, 40), (40, 80), (80, 160), (160, 80), (80, 2)]

MAX_TB = 4096  # batch tile (lanes); review: 2048-4096; <6 MiB VMEM/step even at 4096

# dot_general dimension numbers contracting dim 1 of both operands (A @ B^T on the MXU).
_NT_DIMS = (((1,), (1,)), ((), ()))


def _round_up(n, m):
    return ((n + m - 1) // m) * m


def _softplus(z):
    # Stable softplus; matches torch.nn.Softplus(beta=1) (threshold branch agrees to <2e-9).
    return jnp.maximum(z, 0.0) + jnp.log1p(jnp.exp(-jnp.abs(z)))


def mlp_kernel(x_ref,
               w1_ref, b1_ref,
               w2_ref, b2_ref,
               w3_ref, b3_ref,
               w4_ref, b4_ref,
               w5_ref, b5_ref,
               o_ref):
    # x_ref: (TB, 20) f32, natural (batch, feature) layout.
    # w_k:   (out, in) f32 (PyTorch orientation); b_k: (out, 1) f32 (broadcast over lanes).
    # o_ref: (2, TB) f32, lane-dense output store.
    h = jnp.maximum(x_ref[...], 0.0)                                    # relu(x.view(-1,20))
    # Layer 1: contract the shared feature axis of W (out,in) and x (TB,in) directly
    # (no materialized transpose) -> (40, TB): feature-major, batch on the lane axis.
    h = lax.dot_general(w1_ref[...], h, _NT_DIMS,
                        preferred_element_type=jnp.float32) + b1_ref[...]
    h = jnp.maximum(h, 0.0)
    h = jnp.dot(w2_ref[...], h, preferred_element_type=jnp.float32) + b2_ref[...]
    h = jnp.maximum(h, 0.0)
    h = jnp.dot(w3_ref[...], h, preferred_element_type=jnp.float32) + b3_ref[...]
    h = jnp.maximum(h, 0.0)
    h = jnp.dot(w4_ref[...], h, preferred_element_type=jnp.float32) + b4_ref[...]
    h = jnp.maximum(h, 0.0)
    z = jnp.dot(w5_ref[...], h, preferred_element_type=jnp.float32) + b5_ref[...]
    o_ref[...] = _softplus(z).astype(o_ref.dtype)


def prepare_params(params):
    """One-time conversion: w stays (out, in) f32; b becomes a (out, 1) f32 column."""
    return [(jnp.asarray(w, jnp.float32), jnp.asarray(b, jnp.float32).reshape(-1, 1))
            for (w, b) in params]


def comparison_fc_large(x, prepared_params, *, max_tb=MAX_TB):
    """prepared_params: list of (w, b) with w (out, in) f32 and b (out, 1) f32."""
    x2d = x.reshape(-1, 20).astype(jnp.float32)
    B = x2d.shape[0]

    # Batch tile: as large as possible (multiple of 128, capped at max_tb).  If that
    # would leave a single grid step but the batch is splittable, halve the tile so the
    # 'parallel' grid axis has >= 2 steps (keeps both v7x TensorCores busy; free on
    # v5e/v6e).  No wrapper-side padding: the last block may be partial.
    TB = min(max_tb, _round_up(B, 128))
    if B > 128 and pl.cdiv(B, TB) < 2:
        TB = _round_up(pl.cdiv(B, 2), 128)
    grid = (pl.cdiv(B, TB),)

    flat_args = [x2d]
    in_specs = [pl.BlockSpec((TB, 20), lambda i: (i, 0))]
    for (w, b) in prepared_params:
        flat_args += [w, b]
        # Constant index maps -> weights/biases stay VMEM-resident across grid steps.
        in_specs += [pl.BlockSpec(w.shape, lambda i: (0, 0)),
                     pl.BlockSpec(b.shape, lambda i: (0, 0))]

    out = pl.pallas_call(
        mlp_kernel,
        out_shape=jax.ShapeDtypeStruct((2, B), jnp.float32),
        grid=grid,
        in_specs=in_specs,
        out_specs=pl.BlockSpec((2, TB), lambda i: (0, i)),
        compiler_params=pltpu.CompilerParams(
            dimension_semantics=("parallel",),          # v7x: shard batch over both TCs
            vmem_limit_bytes=32 * 1024 * 1024,          # explicit, safe on v5e/v6e/v7x
        ),
    )(*flat_args)

    return out.T                                        # (B, 2), PyTorch output layout


def init_params(key):
    """Deterministic init; weights PyTorch-style (out, in), biases (out,)."""
    params = []
    for (fan_in, fan_out) in DIMS:
        key, kw, kb = jax.random.split(key, 3)
        bound = 1.0 / jnp.sqrt(fan_in)                  # PyTorch Linear default init range
        w = jax.random.uniform(kw, (fan_out, fan_in), jnp.float32, -bound, bound)
        b = jax.random.uniform(kb, (fan_out,), jnp.float32, -bound, bound)
        params.append((w, b))
    return params


def reference(x, params):
    # Pure f32 JAX reference matching the PyTorch forward.
    h = jnp.maximum(x.reshape(-1, 20), 0.0)
    for i, (w, b) in enumerate(params):
        h = h @ w.T + b
        if i < len(params) - 1:
            h = jnp.maximum(h, 0.0)
    return _softplus(h)


if __name__ == "__main__":
    key = jax.random.PRNGKey(0)
    kx, kp = jax.random.split(key)
    # Input: (4, 2, 20) -> view(-1, 20) gives a batch of 8 rows.
    x = jax.random.normal(kx, (4, 2, 20), dtype=jnp.float32)
    params = init_params(kp)
    prepped = prepare_params(params)

    fwd = jax.jit(comparison_fc_large)
    out = jax.block_until_ready(fwd(x, prepped))
    ref = reference(x, params)

    assert out.shape == (8, 2), out.shape
    assert bool(jnp.allclose(out, ref, atol=1e-4, rtol=1e-4)), (out, ref)
    print("KERNEL_OK")
</pallas_src>

<mosaic_0001>
module attributes {stable_mosaic.version = 11 : i64} {
  func.func @mlp_kernel(%arg0: i32, %arg1: memref<128x20xf32, #tpu.memory_space<vmem>>, %arg2: memref<40x20xf32, #tpu.memory_space<vmem>>, %arg3: memref<40x1xf32, #tpu.memory_space<vmem>>, %arg4: memref<80x40xf32, #tpu.memory_space<vmem>>, %arg5: memref<80x1xf32, #tpu.memory_space<vmem>>, %arg6: memref<160x80xf32, #tpu.memory_space<vmem>>, %arg7: memref<160x1xf32, #tpu.memory_space<vmem>>, %arg8: memref<80x160xf32, #tpu.memory_space<vmem>>, %arg9: memref<80x1xf32, #tpu.memory_space<vmem>>, %arg10: memref<2x80xf32, #tpu.memory_space<vmem>>, %arg11: memref<2x1xf32, #tpu.memory_space<vmem>>, %arg12: memref<2x128xf32, #tpu.memory_space<vmem>>) attributes {dimension_semantics = [#tpu.dimension_semantics<parallel>], iteration_bounds = array<i64: 1>, scalar_prefetch = 0 : i64, scratch_operands = 0 : i64, tpu.core_type = #tpu.core_type<tc>, window_params = [{transform_indices = @transform_0, window_bounds = array<i64: 128, 20>}, {pipeline_mode = #tpu.pipeline_mode<synchronous>, transform_indices = @transform_1, window_bounds = array<i64: 40, 20>}, {pipeline_mode = #tpu.pipeline_mode<synchronous>, transform_indices = @transform_2, window_bounds = array<i64: 40, 1>}, {pipeline_mode = #tpu.pipeline_mode<synchronous>, transform_indices = @transform_3, window_bounds = array<i64: 80, 40>}, {pipeline_mode = #tpu.pipeline_mode<synchronous>, transform_indices = @transform_4, window_bounds = array<i64: 80, 1>}, {pipeline_mode = #tpu.pipeline_mode<synchronous>, transform_indices = @transform_5, window_bounds = array<i64: 160, 80>}, {pipeline_mode = #tpu.pipeline_mode<synchronous>, transform_indices = @transform_6, window_bounds = array<i64: 160, 1>}, {pipeline_mode = #tpu.pipeline_mode<synchronous>, transform_indices = @transform_7, window_bounds = array<i64: 80, 160>}, {pipeline_mode = #tpu.pipeline_mode<synchronous>, transform_indices = @transform_8, window_bounds = array<i64: 80, 1>}, {pipeline_mode = #tpu.pipeline_mode<synchronous>, transform_indices = @transform_9, window_bounds = array<i64: 2, 80>}, {pipeline_mode = #tpu.pipeline_mode<synchronous>, transform_indices = @transform_10, window_bounds = array<i64: 2, 1>}, {transform_indices = @transform_11, window_bounds = array<i64: 2, 128>}]} {
    %c0 = arith.constant 0 : index
    %c0_0 = arith.constant 0 : index
    %0 = vector.load %arg1[%c0, %c0_0] : memref<128x20xf32, #tpu.memory_space<vmem>>, vector<128x20xf32>
    %cst = arith.constant 0.000000e+00 : f32
    %1 = vector.broadcast %cst : f32 to vector<128x20xf32>
    %2 = arith.maximumf %0, %1 : vector<128x20xf32>
    %c0_1 = arith.constant 0 : index
    %c0_2 = arith.constant 0 : index
    %3 = vector.load %arg2[%c0_1, %c0_2] : memref<40x20xf32, #tpu.memory_space<vmem>>, vector<40x20xf32>
    %cst_3 = arith.constant dense<0.000000e+00> : vector<40x128xf32>
    %4 = tpu.matmul %3, %2, %cst_3 {dimension_numbers = #tpu.dot_dimension_numbers<[1], [1], [0], [0], [0, 0, 1, 0], [], []>} : vector<40x20xf32>, vector<128x20xf32>, vector<40x128xf32> -> vector<40x128xf32>
    %c0_4 = arith.constant 0 : index
    %c0_5 = arith.constant 0 : index
    %5 = vector.load %arg3[%c0_4, %c0_5] : memref<40x1xf32, #tpu.memory_space<vmem>>, vector<40x1xf32>
    %6 = vector.broadcast %5 : vector<40x1xf32> to vector<40x128xf32>
    %7 = arith.addf %4, %6 : vector<40x128xf32>
    %cst_6 = arith.constant 0.000000e+00 : f32
    %8 = vector.broadcast %cst_6 : f32 to vector<40x128xf32>
    %9 = arith.maximumf %7, %8 : vector<40x128xf32>
    %c0_7 = arith.constant 0 : index
    %c0_8 = arith.constant 0 : index
    %10 = vector.load %arg4[%c0_7, %c0_8] : memref<80x40xf32, #tpu.memory_space<vmem>>, vector<80x40xf32>
    %cst_9 = arith.constant dense<0.000000e+00> : vector<80x128xf32>
    %11 = tpu.matmul %10, %9, %cst_9 {dimension_numbers = #tpu.dot_dimension_numbers<[1], [0], [0], [1], [0, 0, 1, 1], [], []>} : vector<80x40xf32>, vector<40x128xf32>, vector<80x128xf32> -> vector<80x128xf32>
    %c0_10 = arith.constant 0 : index
    %c0_11 = arith.constant 0 : index
    %12 = vector.load %arg5[%c0_10, %c0_11] : memref<80x1xf32, #tpu.memory_space<vmem>>, vector<80x1xf32>
    %13 = vector.broadcast %12 : vector<80x1xf32> to vector<80x128xf32>
    %14 = arith.addf %11, %13 : vector<80x128xf32>
    %cst_12 = arith.constant 0.000000e+00 : f32
    %15 = vector.broadcast %cst_12 : f32 to vector<80x128xf32>
    %16 = arith.maximumf %14, %15 : vector<80x128xf32>
    %c0_13 = arith.constant 0 : index
    %c0_14 = arith.constant 0 : index
    %17 = vector.load %arg6[%c0_13, %c0_14] : memref<160x80xf32, #tpu.memory_space<vmem>>, vector<160x80xf32>
    %cst_15 = arith.constant dense<0.000000e+00> : vector<160x128xf32>
    %18 = tpu.matmul %17, %16, %cst_15 {dimension_numbers = #tpu.dot_dimension_numbers<[1], [0], [0], [1], [0, 0, 1, 1], [], []>} : vector<160x80xf32>, vector<80x128xf32>, vector<160x128xf32> -> vector<160x128xf32>
    %c0_16 = arith.constant 0 : index
    %c0_17 = arith.constant 0 : index
    %19 = vector.load %arg7[%c0_16, %c0_17] : memref<160x1xf32, #tpu.memory_space<vmem>>, vector<160x1xf32>
    %20 = vector.broadcast %19 : vector<160x1xf32> to vector<160x128xf32>
    %21 = arith.addf %18, %20 : vector<160x128xf32>
    %cst_18 = arith.constant 0.000000e+00 : f32
    %22 = vector.broadcast %cst_18 : f32 to vector<160x128xf32>
    %23 = arith.maximumf %21, %22 : vector<160x128xf32>
    %c0_19 = arith.constant 0 : index
    %c0_20 = arith.constant 0 : index
    %24 = vector.load %arg8[%c0_19, %c0_20] : memref<80x160xf32, #tpu.memory_space<vmem>>, vector<80x160xf32>
    %cst_21 = arith.constant dense<0.000000e+00> : vector<80x128xf32>
    %25 = tpu.matmul %24, %23, %cst_21 {dimension_numbers = #tpu.dot_dimension_numbers<[1], [0], [0], [1], [0, 0, 1, 1], [], []>} : vector<80x160xf32>, vector<160x128xf32>, vector<80x128xf32> -> vector<80x128xf32>
    %c0_22 = arith.constant 0 : index
    %c0_23 = arith.constant 0 : index
    %26 = vector.load %arg9[%c0_22, %c0_23] : memref<80x1xf32, #tpu.memory_space<vmem>>, vector<80x1xf32>
    %27 = vector.broadcast %26 : vector<80x1xf32> to vector<80x128xf32>
    %28 = arith.addf %25, %27 : vector<80x128xf32>
    %cst_24 = arith.constant 0.000000e+00 : f32
    %29 = vector.broadcast %cst_24 : f32 to vector<80x128xf32>
    %30 = arith.maximumf %28, %29 : vector<80x128xf32>
    %c0_25 = arith.constant 0 : index
    %c0_26 = arith.constant 0 : index
    %31 = vector.load %arg10[%c0_25, %c0_26] : memref<2x80xf32, #tpu.memory_space<vmem>>, vector<2x80xf32>
    %cst_27 = arith.constant dense<0.000000e+00> : vector<2x128xf32>
    %32 = tpu.matmul %31, %30, %cst_27 {dimension_numbers = #tpu.dot_dimension_numbers<[1], [0], [0], [1], [0, 0, 1, 1], [], []>} : vector<2x80xf32>, vector<80x128xf32>, vector<2x128xf32> -> vector<2x128xf32>
    %c0_28 = arith.constant 0 : index
    %c0_29 = arith.constant 0 : index
    %33 = vector.load %arg11[%c0_28, %c0_29] : memref<2x1xf32, #tpu.memory_space<vmem>>, vector<2x1xf32>
    %34 = vector.broadcast %33 : vector<2x1xf32> to vector<2x128xf32>
    %35 = arith.addf %32, %34 : vector<2x128xf32>
    %cst_30 = arith.constant 0.000000e+00 : f32
    %36 = vector.broadcast %cst_30 : f32 to vector<2x128xf32>
    %37 = arith.maximumf %35, %36 : vector<2x128xf32>
    %38 = math.absf %35 : vector<2x128xf32>
    %cst_31 = arith.constant 0.000000e+00 : f32
    %39 = vector.broadcast %cst_31 : f32 to vector<2x128xf32>
    %40 = arith.subf %39, %38 : vector<2x128xf32>
    %41 = math.exp %40 : vector<2x128xf32>
    %42 = math.log1p %41 : vector<2x128xf32>
    %43 = arith.addf %37, %42 : vector<2x128xf32>
    %c0_32 = arith.constant 0 : index
    %c0_33 = arith.constant 0 : index
    %44 = vector.load %arg12[%c0_32, %c0_33] : memref<2x128xf32, #tpu.memory_space<vmem>>, vector<2x128xf32>
    tpu.vector_store %arg12[%c0_32, %c0_33], %43 {strides = array<i32>} : memref<2x128xf32, #tpu.memory_space<vmem>>, vector<2x128xf32>,
    return
  }
  func.func @transform_0(%arg0: i32) -> (i32, i32) {
    %c0_i32 = arith.constant 0 : i32
    %c0_i32_0 = arith.constant 0 : i32
    return %arg0, %c0_i32 : i32, i32
  }
  func.func @transform_1(%arg0: i32) -> (i32, i32) {
    %c0_i32 = arith.constant 0 : i32
    %c0_i32_0 = arith.constant 0 : i32
    %c0_i32_1 = arith.constant 0 : i32
    return %c0_i32, %c0_i32_0 : i32, i32
  }
  func.func @transform_2(%arg0: i32) -> (i32, i32) {
    %c0_i32 = arith.constant 0 : i32
    %c0_i32_0 = arith.constant 0 : i32
    %c0_i32_1 = arith.constant 0 : i32
    return %c0_i32, %c0_i32_0 : i32, i32
  }
  func.func @transform_3(%arg0: i32) -> (i32, i32) {
    %c0_i32 = arith.constant 0 : i32
    %c0_i32_0 = arith.constant 0 : i32
    %c0_i32_1 = arith.constant 0 : i32
    return %c0_i32, %c0_i32_0 : i32, i32
  }
  func.func @transform_4(%arg0: i32) -> (i32, i32) {
    %c0_i32 = arith.constant 0 : i32
    %c0_i32_0 = arith.constant 0 : i32
    %c0_i32_1 = arith.constant 0 : i32
    return %c0_i32, %c0_i32_0 : i32, i32
  }
  func.func @transform_5(%arg0: i32) -> (i32, i32) {
    %c0_i32 = arith.constant 0 : i32
    %c0_i32_0 = arith.constant 0 : i32
    %c0_i32_1 = arith.constant 0 : i32
    return %c0_i32, %c0_i32_0 : i32, i32
  }
  func.func @transform_6(%arg0: i32) -> (i32, i32) {
    %c0_i32 = arith.constant 0 : i32
    %c0_i32_0 = arith.constant 0 : i32
    %c0_i32_1 = arith.constant 0 : i32
    return %c0_i32, %c0_i32_0 : i32, i32
  }
  func.func @transform_7(%arg0: i32) -> (i32, i32) {
    %c0_i32 = arith.constant 0 : i32
    %c0_i32_0 = arith.constant 0 : i32
    %c0_i32_1 = arith.constant 0 : i32
    return %c0_i32, %c0_i32_0 : i32, i32
  }
  func.func @transform_8(%arg0: i32) -> (i32, i32) {
    %c0_i32 = arith.constant 0 : i32
    %c0_i32_0 = arith.constant 0 : i32
    %c0_i32_1 = arith.constant 0 : i32
    return %c0_i32, %c0_i32_0 : i32, i32
  }
  func.func @transform_9(%arg0: i32) -> (i32, i32) {
    %c0_i32 = arith.constant 0 : i32
    %c0_i32_0 = arith.constant 0 : i32
    %c0_i32_1 = arith.constant 0 : i32
    return %c0_i32, %c0_i32_0 : i32, i32
  }
  func.func @transform_10(%arg0: i32) -> (i32, i32) {
    %c0_i32 = arith.constant 0 : i32
    %c0_i32_0 = arith.constant 0 : i32
    %c0_i32_1 = arith.constant 0 : i32
    return %c0_i32, %c0_i32_0 : i32, i32
  }
  func.func @transform_11(%arg0: i32) -> (i32, i32) {
    %c0_i32 = arith.constant 0 : i32
    %c0_i32_0 = arith.constant 0 : i32
    return %c0_i32, %arg0 : i32, i32
  }
}

</mosaic_0001>

<llo_original>
// kernel: comparison_fc_large.1
$region0: #{comparison_fc_large.1}
  #allocation0 [shape = 'u32[]', space=smem, size = 0x4, offset = 0x4, fixed_abs, tag = 'smem constant byte address 0x4 - core index']
  #allocation1 [shape = 'u32[144,128]{1,0:T(1,128)}', space=vmem, size = 0x12000, scoped, tag = 'internal scratch']
  %s0 = inlined_call_operand.vmem [shape: f32[8,20], index: 0, kind: input, shape index: {}]
  %s1 = inlined_call_operand.vmem [shape: f32[40,20], index: 1, kind: input, shape index: {}]
  %s2 = inlined_call_operand.vmem [shape: f32[40,1], index: 2, kind: input, shape index: {}]
  %s3 = inlined_call_operand.vmem [shape: f32[80,40], index: 3, kind: input, shape index: {}]
  %s4 = inlined_call_operand.vmem [shape: f32[80,1], index: 4, kind: input, shape index: {}]
  %s5 = inlined_call_operand.vmem [shape: f32[160,80], index: 5, kind: input, shape index: {}]
  %s6 = inlined_call_operand.vmem [shape: f32[160,1], index: 6, kind: input, shape index: {}]
  %s7 = inlined_call_operand.vmem [shape: f32[80,160], index: 7, kind: input, shape index: {}]
  %s8 = inlined_call_operand.vmem [shape: f32[80,1], index: 8, kind: input, shape index: {}]
  %s9 = inlined_call_operand.vmem [shape: f32[2,80], index: 9, kind: input, shape index: {}]
  %s10 = inlined_call_operand.vmem [shape: f32[2,1], index: 10, kind: input, shape index: {}]
  %s11 = inlined_call_operand.hbm [shape: f32[2,8], index: 11, kind: output, shape index: {}]
  %s12 = sld [smem:[#allocation0]]
  $region54: #{comparison_fc_large.1} parent=0
    _
  %s14 = ssub.s32 1, %s12
  %s15 = scalar_select 0, %s14, %s12
  $region1: #{comparison_fc_large.1} parent=0
    #allocation2 [shape = 'u8[1024]{0}', space=vmem, size = 0x400, scoped, tag = 'output window, operand 0, single buffered']
    #allocation3 [shape = 's32[1]{0}', space=sflag, size = 0x4, scoped, tag = 'scoped memory for comparison_fc_large.1']
    %16 = vsyncpa [#allocation3], 0
    // Predicated region
    $region2: #{comparison_fc_large.1} parent=1 // pred_check
      _
    $region3: #{comparison_fc_large.1} parent=1 // pred_check_branch
      %18 = sbr.rel (0) target = $region5
    $region4: #{comparison_fc_large.1} parent=1 // pred_region
      _
    $region5: #{comparison_fc_large.1} parent=1 // pred_fallthru
      _
    // Predicated region
    $region6: #{comparison_fc_large.1} parent=1 // pred_check
      _
    $region7: #{comparison_fc_large.1} parent=1 // pred_check_branch
      %20 = sbr.rel (0) target = $region9
    $region8: #{comparison_fc_large.1} parent=1 // pred_region
      _
    $region9: #{comparison_fc_large.1} parent=1 // pred_fallthru
      _
    // Predicated region
    $region10: #{comparison_fc_large.1} parent=1 // pred_check
      _
    $region11: #{comparison_fc_large.1} parent=1 // pred_check_branch
      %22 = sbr.rel (0) target = $region13
    $region12: #{comparison_fc_large.1} parent=1 // pred_region
      _
    $region13: #{comparison_fc_large.1} parent=1 // pred_fallthru
      _
    // Predicated region
    $region14: #{comparison_fc_large.1} parent=1 // pred_check
      _
    $region15: #{comparison_fc_large.1} parent=1 // pred_check_branch
      %24 = sbr.rel (0) target = $region17
    $region16: #{comparison_fc_large.1} parent=1 // pred_region
      _
    $region17: #{comparison_fc_large.1} parent=1 // pred_fallthru
      _
    // Predicated region
    $region18: #{comparison_fc_large.1} parent=1 // pred_check
      _
    $region19: #{comparison_fc_large.1} parent=1 // pred_check_branch
      %26 = sbr.rel (0) target = $region21
    $region20: #{comparison_fc_large.1} parent=1 // pred_region
      _
    $region21: #{comparison_fc_large.1} parent=1 // pred_fallthru
      _
    // Predicated region
    $region22: #{comparison_fc_large.1} parent=1 // pred_check
      _
    $region23: #{comparison_fc_large.1} parent=1 // pred_check_branch
      %28 = sbr.rel (0) target = $region25
    $region24: #{comparison_fc_large.1} parent=1 // pred_region
      _
    $region25: #{comparison_fc_large.1} parent=1 // pred_fallthru
      _
    // Predicated region
    $region26: #{comparison_fc_large.1} parent=1 // pred_check
      _
    $region27: #{comparison_fc_large.1} parent=1 // pred_check_branch
      %30 = sbr.rel (0) target = $region29
    $region28: #{comparison_fc_large.1} parent=1 // pred_region
      _
    $region29: #{comparison_fc_large.1} parent=1 // pred_fallthru
      _
    // Predicated region
    $region30: #{comparison_fc_large.1} parent=1 // pred_check
      _
    $region31: #{comparison_fc_large.1} parent=1 // pred_check_branch
      %32 = sbr.rel (0) target = $region33
    $region32: #{comparison_fc_large.1} parent=1 // pred_region
      _
    $region33: #{comparison_fc_large.1} parent=1 // pred_fallthru
      _
    // Predicated region
    $region34: #{comparison_fc_large.1} parent=1 // pred_check
      _
    $region35: #{comparison_fc_large.1} parent=1 // pred_check_branch
      %34 = sbr.rel (0) target = $region37
    $region36: #{comparison_fc_large.1} parent=1 // pred_region
      _
    $region37: #{comparison_fc_large.1} parent=1 // pred_fallthru
      _
    // Predicated region
    $region38: #{comparison_fc_large.1} parent=1 // pred_check
      _
    $region39: #{comparison_fc_large.1} parent=1 // pred_check_branch
      %36 = sbr.rel (0) target = $region41
    $region40: #{comparison_fc_large.1} parent=1 // pred_region
      _
    $region41: #{comparison_fc_large.1} parent=1 // pred_fallthru
      _
    // Predicated region
    $region42: #{comparison_fc_large.1} parent=1 // pred_check
      _
    $region43: #{comparison_fc_large.1} parent=1 // pred_check_branch
      %38 = sbr.rel (0) target = $region45
    $region44: #{comparison_fc_large.1} parent=1 // pred_region
      _
    $region45: #{comparison_fc_large.1} parent=1 // pred_fallthru
      _
    %v39 = vld [vmem:[%s0] sm:$0xff]
    %v40 = vld [vmem:[%s0 + $0x8] sm:$0xff]
    %v41 = vld [vmem:[%s0 + $0x10] sm:$0xff]
    %v42 = vld [vmem:[%s0 + $0x18] sm:$0xff]
    %v43 = vld [vmem:[%s0 + $0x20] sm:$0xff]
    %v44 = vld [vmem:[%s0 + $0x28] sm:$0xff]
    %v45 = vld [vmem:[%s0 + $0x30] sm:$0xff]
    %v46 = vld [vmem:[%s0 + $0x38] sm:$0xff]
    %v47 = vld [vmem:[%s0 + $0x40] sm:$0xff]
    %v48 = vld [vmem:[%s0 + $0x48] sm:$0xff]
    %v49 = vld [vmem:[%s0 + $0x50] sm:$0xff]
    %v50 = vld [vmem:[%s0 + $0x58] sm:$0xff]
    %v51 = vld [vmem:[%s0 + $0x60] sm:$0xff]
    %v52 = vld [vmem:[%s0 + $0x68] sm:$0xff]
    %v53 = vld [vmem:[%s0 + $0x70] sm:$0xff]
    %v54 = vld [vmem:[%s0 + $0x78] sm:$0xff]
    %v55 = vmax.f32 %v39, 0.0
    %v56 = vmax.f32 %v40, 0.0
    %v57 = vmax.f32 %v41, 0.0
    %v58 = vmax.f32 %v42, 0.0
    %v59 = vmax.f32 %v43, 0.0
    %v60 = vmax.f32 %v44, 0.0
    %v61 = vmax.f32 %v45, 0.0
    %v62 = vmax.f32 %v46, 0.0
    %v63 = vmax.f32 %v47, 0.0
    %v64 = vmax.f32 %v48, 0.0
    %v65 = vmax.f32 %v49, 0.0
    %v66 = vmax.f32 %v50, 0.0
    %v67 = vmax.f32 %v51, 0.0
    %v68 = vmax.f32 %v52, 0.0
    %v69 = vmax.f32 %v53, 0.0
    %v70 = vmax.f32 %v54, 0.0
    %v71 = vld [vmem:[%s1] sm:$0xff]
    %v72 = vld [vmem:[%s1 + $0x8] sm:$0xff]
    %v73 = vld [vmem:[%s1 + $0x10] sm:$0xff]
    %v74 = vld [vmem:[%s1 + $0x18] sm:$0xff]
    %v75 = vld [vmem:[%s1 + $0x20] sm:$0xff]
    %v76 = vld [vmem:[%s2] sm:$0xff]
    %v77 = vld [vmem:[%s2 + $0x8] sm:$0xff]
    %v78 = vld [vmem:[%s2 + $0x10] sm:$0xff]
    %v79 = vld [vmem:[%s2 + $0x18] sm:$0xff]
    %v80 = vld [vmem:[%s2 + $0x20] sm:$0xff]
    %82 = vset.pattern.permute.xlu0 0
    %83 = vperm.xlu0 %82, %v76
    %v84 = vpop.permute.xlu0 %83
    %87 = vset.pattern.permute.xlu0 0
    %88 = vperm.xlu0 %87, %v77
    %v89 = vpop.permute.xlu0 %88
    %92 = vset.pattern.permute.xlu0 0
    %93 = vperm.xlu0 %92, %v78
    %v94 = vpop.permute.xlu0 %93
    %97 = vset.pattern.permute.xlu0 0
    %98 = vperm.xlu0 %97, %v79
    %v99 = vpop.permute.xlu0 %98
    %102 = vset.pattern.permute.xlu0 0
    %103 = vperm.xlu0 %102, %v80
    %v104 = vpop.permute.xlu0 %103
    %vm106 = vcmask 162816
    %v108 = vsel %vm106, %v71, 0
    %v111 = vsel %vm106, %v72, 0
    %v114 = vsel %vm106, %v73, 0
    %v117 = vsel %vm106, %v74, 0
    %v120 = vsel %vm106, %v75, 0
    %v123 = vsel %vm106, %v55, 0
    %v126 = vsel %vm106, %v56, 0
    %v129 = vsel %vm106, %v57, 0
    %v132 = vsel %vm106, %v58, 0
    %v135 = vsel %vm106, %v59, 0
    %v138 = vsel %vm106, %v60, 0
    %v141 = vsel %vm106, %v61, 0
    %v144 = vsel %vm106, %v62, 0
    %v147 = vsel %vm106, %v63, 0
    %v150 = vsel %vm106, %v64, 0
    %v153 = vsel %vm106, %v65, 0
    %v156 = vsel %vm106, %v66, 0
    %v159 = vsel %vm106, %v67, 0
    %v162 = vsel %vm106, %v68, 0
    %v165 = vsel %vm106, %v69, 0
    %v168 = vsel %vm106, %v70, 0
    %170 = vmatprep.subr.mxu0 0.0
    %171 = vmatpush1.xpose.msra.mxu0 %v168
    %172 = vmatprep.subr.mxu0 0.0
    %173 = vmatpush1.xpose.msra.mxu0 %v165
    %174 = vmatprep.subr.mxu0 0.0
    %175 = vmatpush1.xpose.msra.mxu0 %v162
    %176 = vmatprep.subr.mxu0 0.0
    %177 = vmatpush1.xpose.msra.mxu0 %v159
    %178 = vmatprep.subr.mxu0 0.0
    %179 = vmatpush1.xpose.msra.mxu0 %v156
    %180 = vmatprep.subr.mxu0 0.0
    %181 = vmatpush1.xpose.msra.mxu0 %v153
    %182 = vmatprep.subr.mxu0 0.0
    %183 = vmatpush1.xpose.msra.mxu0 %v150
    %184 = vmatprep.subr.mxu0 0.0
    %185 = vmatpush1.xpose.msra.mxu0 %v147
    %186 = vmatprep.subr.mxu0 0.0
    %187 = vmatpush1.xpose.msra.mxu0 %v144
    %188 = vmatprep.subr.mxu0 0.0
    %189 = vmatpush1.xpose.msra.mxu0 %v141
    %190 = vmatprep.subr.mxu0 0.0
    %191 = vmatpush1.xpose.msra.mxu0 %v138
    %192 = vmatprep.subr.mxu0 0.0
    %193 = vmatpush1.xpose.msra.mxu0 %v135
    %194 = vmatprep.subr.mxu0 0.0
    %195 = vmatpush1.xpose.msra.mxu0 %v132
    %196 = vmatprep.subr.mxu0 0.0
    %197 = vmatpush1.xpose.msra.mxu0 %v129
    %198 = vmatprep.subr.mxu0 0.0
    %199 = vmatpush1.xpose.msra.mxu0 %v126
    %200 = vmatprep.subr.mxu0 0.0
    %201 = vmatpush1.xpose.msra.mxu0 %v123
    %202 = vmatprep.subr.mxu0 0.0
    %203 = vmatpush2.xpose.msra.mxu0 0.0
    %204 = vmatprep.subr.mxu0 0.0
    %205 = vmatpush2.xpose.msra.mxu0 0.0
    %206 = vmatprep.subr.mxu0 0.0
    %207 = vmatpush2.xpose.msra.mxu0 0.0
    %208 = vmatprep.subr.mxu0 0.0
    %209 = vmatpush2.xpose.msra.mxu0 0.0
    %210 = vmatprep.subr.mxu0 0.0
    %211 = vmatpush2.xpose.msra.mxu0 0.0
    %212 = vmatprep.subr.mxu0 0.0
    %213 = vmatpush2.xpose.msra.mxu0 0.0
    %214 = vmatprep.subr.mxu0 0.0
    %215 = vmatpush2.xpose.msra.mxu0 0.0
    %216 = vmatprep.subr.mxu0 0.0
    %217 = vmatpush2.xpose.msra.mxu0 0.0
    %218 = vmatprep.subr.mxu0 0.0
    %219 = vmatpush2.xpose.msra.mxu0 0.0
    %220 = vmatprep.subr.mxu0 0.0
    %221 = vmatpush2.xpose.msra.mxu0 0.0
    %222 = vmatprep.subr.mxu0 0.0
    %223 = vmatpush2.xpose.msra.mxu0 0.0
    %224 = vmatprep.subr.mxu0 0.0
    %225 = vmatpush2.xpose.msra.mxu0 0.0
    %226 = vmatprep.subr.mxu0 0.0
    %227 = vmatpush2.xpose.msra.mxu0 0.0
    %228 = vmatprep.subr.mxu0 0.0
    %229 = vmatpush2.xpose.msra.mxu0 0.0
    %230 = vmatprep.subr.mxu0 0.0
    %231 = vmatpush2.xpose.msra.mxu0 0.0
    %232 = vmatprep.subr.mxu0 0.0
    %233 = vmatpush2.xpose.msra.mxu0 0.0
    %234 = vmatprep.mubr.f32.mxu0 0.0
    %235 = vmatmul.mubr.f32.gmra.mxu0 %v108
    %v236 = vpop.f32.mrf.mxu0
    %v237 = vadd.f32 %v84, %v236
    %v238 = vpop.f32.mrf.mxu0
    %239 = vmatprep.mubr.f32.mxu0 0.0
    %240 = vmatmul.mubr.f32.gmra.mxu0 %v111
    %v241 = vpop.f32.mrf.mxu0
    %v242 = vadd.f32 %v89, %v241
    %v243 = vpop.f32.mrf.mxu0
    %244 = vmatprep.mubr.f32.mxu0 0.0
    %245 = vmatmul.mubr.f32.gmra.mxu0 %v114
    %v246 = vpop.f32.mrf.mxu0
    %v247 = vadd.f32 %v94, %v246
    %v248 = vpop.f32.mrf.mxu0
    %249 = vmatprep.mubr.f32.mxu0 0.0
    %250 = vmatmul.mubr.f32.gmra.mxu0 %v117
    %v251 = vpop.f32.mrf.mxu0
    %v252 = vadd.f32 %v99, %v251
    %v253 = vpop.f32.mrf.mxu0
    %254 = vmatprep.mubr.f32.mxu0 0.0
    %255 = vmatmul.mubr.f32.gmra.mxu0 %v120
    %v256 = vpop.f32.mrf.mxu0
    %v257 = vadd.f32 %v104, %v256
    %v258 = vpop.f32.mrf.mxu0
    %259 = vdwg.mxu0
    %v260 = vmax.f32 %v237, 0.0
    %v261 = vmax.f32 %v242, 0.0
    %v262 = vmax.f32 %v247, 0.0
    %v263 = vmax.f32 %v252, 0.0
    %v264 = vmax.f32 %v257, 0.0
    %v265 = vld [vmem:[%s3] sm:$0xff]
    %v266 = vld [vmem:[%s3 + $0x8] sm:$0xff]
    %v267 = vld [vmem:[%s3 + $0x10] sm:$0xff]
    %v268 = vld [vmem:[%s3 + $0x18] sm:$0xff]
    %v269 = vld [vmem:[%s3 + $0x20] sm:$0xff]
    %v270 = vld [vmem:[%s3 + $0x28] sm:$0xff]
    %v271 = vld [vmem:[%s3 + $0x30] sm:$0xff]
    %v272 = vld [vmem:[%s3 + $0x38] sm:$0xff]
    %v273 = vld [vmem:[%s3 + $0x40] sm:$0xff]
    %v274 = vld [vmem:[%s3 + $0x48] sm:$0xff]
    %v275 = vld [vmem:[%s4] sm:$0xff]
    %v276 = vld [vmem:[%s4 + $0x8] sm:$0xff]
    %v277 = vld [vmem:[%s4 + $0x10] sm:$0xff]
    %v278 = vld [vmem:[%s4 + $0x18] sm:$0xff]
    %v279 = vld [vmem:[%s4 + $0x20] sm:$0xff]
    %v280 = vld [vmem:[%s4 + $0x28] sm:$0xff]
    %v281 = vld [vmem:[%s4 + $0x30] sm:$0xff]
    %v282 = vld [vmem:[%s4 + $0x38] sm:$0xff]
    %v283 = vld [vmem:[%s4 + $0x40] sm:$0xff]
    %v284 = vld [vmem:[%s4 + $0x48] sm:$0xff]
    %286 = vset.pattern.permute.xlu0 0
    %287 = vperm.xlu0 %286, %v275
    %v288 = vpop.permute.xlu0 %287
    %291 = vset.pattern.permute.xlu0 0
    %292 = vperm.xlu0 %291, %v276
    %v293 = vpop.permute.xlu0 %292
    %296 = vset.pattern.permute.xlu0 0
    %297 = vperm.xlu0 %296, %v277
    %v298 = vpop.permute.xlu0 %297
    %301 = vset.pattern.permute.xlu0 0
    %302 = vperm.xlu0 %301, %v278
    %v303 = vpop.permute.xlu0 %302
    %306 = vset.pattern.permute.xlu0 0
    %307 = vperm.xlu0 %306, %v279
    %v308 = vpop.permute.xlu0 %307
    %311 = vset.pattern.permute.xlu0 0
    %312 = vperm.xlu0 %311, %v280
    %v313 = vpop.permute.xlu0 %312
    %316 = vset.pattern.permute.xlu0 0
    %317 = vperm.xlu0 %316, %v281
    %v318 = vpop.permute.xlu0 %317
    %321 = vset.pattern.permute.xlu0 0
    %322 = vperm.xlu0 %321, %v282
    %v323 = vpop.permute.xlu0 %322
    %326 = vset.pattern.permute.xlu0 0
    %327 = vperm.xlu0 %326, %v283
    %v328 = vpop.permute.xlu0 %327
    %331 = vset.pattern.permute.xlu0 0
    %332 = vperm.xlu0 %331, %v284
    %v333 = vpop.permute.xlu0 %332
    %vm335 = vcmask 326656
    %v337 = vsel %vm335, %v265, 0
    %v340 = vsel %vm335, %v266, 0
    %v343 = vsel %vm335, %v267, 0
    %v346 = vsel %vm335, %v268, 0
    %v349 = vsel %vm335, %v269, 0
    %v352 = vsel %vm335, %v270, 0
    %v355 = vsel %vm335, %v271, 0
    %v358 = vsel %vm335, %v272, 0
    %v361 = vsel %vm335, %v273, 0
    %v364 = vsel %vm335, %v274, 0
    %366 = vmatprep.subr.mxu0 0.0
    %367 = vmatpush1.msra.mxu0 0.0
    %368 = vmatprep.subr.mxu0 0.0
    %369 = vmatpush1.msra.mxu0 0.0
    %370 = vmatprep.subr.mxu0 0.0
    %371 = vmatpush1.msra.mxu0 0.0
    %372 = vmatprep.subr.mxu0 0.0
    %373 = vmatpush1.msra.mxu0 0.0
    %374 = vmatprep.subr.mxu0 0.0
    %375 = vmatpush1.msra.mxu0 0.0
    %376 = vmatprep.subr.mxu0 0.0
    %377 = vmatpush1.msra.mxu0 0.0
    %378 = vmatprep.subr.mxu0 0.0
    %379 = vmatpush1.msra.mxu0 0.0
    %380 = vmatprep.subr.mxu0 0.0
    %381 = vmatpush1.msra.mxu0 0.0
    %382 = vmatprep.subr.mxu0 0.0
    %383 = vmatpush1.msra.mxu0 0.0
    %384 = vmatprep.subr.mxu0 0.0
    %385 = vmatpush1.msra.mxu0 0.0
    %386 = vmatprep.subr.mxu0 0.0
    %387 = vmatpush1.msra.mxu0 0.0
    %388 = vmatprep.subr.mxu0 0.0
    %389 = vmatpush1.msra.mxu0 %v264
    %390 = vmatprep.subr.mxu0 0.0
    %391 = vmatpush1.msra.mxu0 %v263
    %392 = vmatprep.subr.mxu0 0.0
    %393 = vmatpush1.msra.mxu0 %v262
    %394 = vmatprep.subr.mxu0 0.0
    %395 = vmatpush1.msra.mxu0 %v261
    %396 = vmatprep.subr.mxu0 0.0
    %397 = vmatpush1.msra.mxu0 %v260
    %398 = vmatprep.subr.mxu0 0.0
    %399 = vmatpush2.msra.mxu0 0.0
    %400 = vmatprep.subr.mxu0 0.0
    %401 = vmatpush2.msra.mxu0 0.0
    %402 = vmatprep.subr.mxu0 0.0
    %403 = vmatpush2.msra.mxu0 0.0
    %404 = vmatprep.subr.mxu0 0.0
    %405 = vmatpush2.msra.mxu0 0.0
    %406 = vmatprep.subr.mxu0 0.0
    %407 = vmatpush2.msra.mxu0 0.0
    %408 = vmatprep.subr.mxu0 0.0
    %409 = vmatpush2.msra.mxu0 0.0
    %410 = vmatprep.subr.mxu0 0.0
    %411 = vmatpush2.msra.mxu0 0.0
    %412 = vmatprep.subr.mxu0 0.0
    %413 = vmatpush2.msra.mxu0 0.0
    %414 = vmatprep.subr.mxu0 0.0
    %415 = vmatpush2.msra.mxu0 0.0
    %416 = vmatprep.subr.mxu0 0.0
    %417 = vmatpush2.msra.mxu0 0.0
    %418 = vmatprep.subr.mxu0 0.0
    %419 = vmatpush2.msra.mxu0 0.0
    %420 = vmatprep.subr.mxu0 0.0
    %421 = vmatpush2.msra.mxu0 0.0
    %422 = vmatprep.subr.mxu0 0.0
    %423 = vmatpush2.msra.mxu0 0.0
    %424 = vmatprep.subr.mxu0 0.0
    %425 = vmatpush2.msra.mxu0 0.0
    %426 = vmatprep.subr.mxu0 0.0
    %427 = vmatpush2.msra.mxu0 0.0
    %428 = vmatprep.subr.mxu0 0.0
    %429 = vmatpush2.msra.mxu0 0.0
    %430 = vmatprep.mubr.f32.mxu0 0.0
    %431 = vmatmul.mubr.f32.gmra.mxu0 %v337
    %v432 = vpop.f32.mrf.mxu0
    %v433 = vadd.f32 %v288, %v432
    %v434 = vpop.f32.mrf.mxu0
    %435 = vmatprep.mubr.f32.mxu0 0.0
    %436 = vmatmul.mubr.f32.gmra.mxu0 %v340
    %v437 = vpop.f32.mrf.mxu0
    %v438 = vadd.f32 %v293, %v437
    %v439 = vpop.f32.mrf.mxu0
    %440 = vmatprep.mubr.f32.mxu0 0.0
    %441 = vmatmul.mubr.f32.gmra.mxu0 %v343
    %v442 = vpop.f32.mrf.mxu0
    %v443 = vadd.f32 %v298, %v442
    %v444 = vpop.f32.mrf.mxu0
    %445 = vmatprep.mubr.f32.mxu0 0.0
    %446 = vmatmul.mubr.f32.gmra.mxu0 %v346
    %v447 = vpop.f32.mrf.mxu0
    %v448 = vadd.f32 %v303, %v447
    %v449 = vpop.f32.mrf.mxu0
    %450 = vmatprep.mubr.f32.mxu0 0.0
    %451 = vmatmul.mubr.f32.gmra.mxu0 %v349
    %v452 = vpop.f32.mrf.mxu0
    %v453 = vadd.f32 %v308, %v452
    %v454 = vpop.f32.mrf.mxu0
    %455 = vmatprep.mubr.f32.mxu0 0.0
    %456 = vmatmul.mubr.f32.gmra.mxu0 %v352
    %v457 = vpop.f32.mrf.mxu0
    %v458 = vadd.f32 %v313, %v457
    %v459 = vpop.f32.mrf.mxu0
    %460 = vmatprep.mubr.f32.mxu0 0.0
    %461 = vmatmul.mubr.f32.gmra.mxu0 %v355
    %v462 = vpop.f32.mrf.mxu0
    %v463 = vadd.f32 %v318, %v462
    %v464 = vpop.f32.mrf.mxu0
    %465 = vmatprep.mubr.f32.mxu0 0.0
    %466 = vmatmul.mubr.f32.gmra.mxu0 %v358
    %v467 = vpop.f32.mrf.mxu0
    %v468 = vadd.f32 %v323, %v467
    %v469 = vpop.f32.mrf.mxu0
    %470 = vmatprep.mubr.f32.mxu0 0.0
    %471 = vmatmul.mubr.f32.gmra.mxu0 %v361
    %v472 = vpop.f32.mrf.mxu0
    %v473 = vadd.f32 %v328, %v472
    %v474 = vpop.f32.mrf.mxu0
    %475 = vmatprep.mubr.f32.mxu0 0.0
    %476 = vmatmul.mubr.f32.gmra.mxu0 %v364
    %v477 = vpop.f32.mrf.mxu0
    %v478 = vadd.f32 %v333, %v477
    %v479 = vpop.f32.mrf.mxu0
    %480 = vdwg.mxu0
    %v481 = vmax.f32 %v433, 0.0
    %v482 = vmax.f32 %v438, 0.0
    %v483 = vmax.f32 %v443, 0.0
    %v484 = vmax.f32 %v448, 0.0
    %v485 = vmax.f32 %v453, 0.0
    %v486 = vmax.f32 %v458, 0.0
    %v487 = vmax.f32 %v463, 0.0
    %v488 = vmax.f32 %v468, 0.0
    %v489 = vmax.f32 %v473, 0.0
    %v490 = vmax.f32 %v478, 0.0
    %v491 = vld [vmem:[%s5] sm:$0xff]
    %v492 = vld [vmem:[%s5 + $0x8] sm:$0xff]
    %v493 = vld [vmem:[%s5 + $0x10] sm:$0xff]
    %v494 = vld [vmem:[%s5 + $0x18] sm:$0xff]
    %v495 = vld [vmem:[%s5 + $0x20] sm:$0xff]
    %v496 = vld [vmem:[%s5 + $0x28] sm:$0xff]
    %v497 = vld [vmem:[%s5 + $0x30] sm:$0xff]
    %v498 = vld [vmem:[%s5 + $0x38] sm:$0xff]
    %v499 = vld [vmem:[%s5 + $0x40] sm:$0xff]
    %v500 = vld [vmem:[%s5 + $0x48] sm:$0xff]
    %v501 = vld [vmem:[%s5 + $0x50] sm:$0xff]
    %v502 = vld [vmem:[%s5 + $0x58] sm:$0xff]
    %v503 = vld [vmem:[%s5 + $0x60] sm:$0xff]
    %v504 = vld [vmem:[%s5 + $0x68] sm:$0xff]
    %v505 = vld [vmem:[%s5 + $0x70] sm:$0xff]
    %v506 = vld [vmem:[%s5 + $0x78] sm:$0xff]
    %v507 = vld [vmem:[%s5 + $0x80] sm:$0xff]
    %v508 = vld [vmem:[%s5 + $0x88] sm:$0xff]
    %v509 = vld [vmem:[%s5 + $0x90] sm:$0xff]
    %v510 = vld [vmem:[%s5 + $0x98] sm:$0xff]
    %v511 = vld [vmem:[%s6] sm:$0xff]
    %v512 = vld [vmem:[%s6 + $0x8] sm:$0xff]
    %v513 = vld [vmem:[%s6 + $0x10] sm:$0xff]
    %v514 = vld [vmem:[%s6 + $0x18] sm:$0xff]
    %v515 = vld [vmem:[%s6 + $0x20] sm:$0xff]
    %v516 = vld [vmem:[%s6 + $0x28] sm:$0xff]
    %v517 = vld [vmem:[%s6 + $0x30] sm:$0xff]
    %v518 = vld [vmem:[%s6 + $0x38] sm:$0xff]
    %v519 = vld [vmem:[%s6 + $0x40] sm:$0xff]
    %v520 = vld [vmem:[%s6 + $0x48] sm:$0xff]
    %v521 = vld [vmem:[%s6 + $0x50] sm:$0xff]
    %v522 = vld [vmem:[%s6 + $0x58] sm:$0xff]
    %v523 = vld [vmem:[%s6 + $0x60] sm:$0xff]
    %v524 = vld [vmem:[%s6 + $0x68] sm:$0xff]
    %v525 = vld [vmem:[%s6 + $0x70] sm:$0xff]
    %v526 = vld [vmem:[%s6 + $0x78] sm:$0xff]
    %v527 = vld [vmem:[%s6 + $0x80] sm:$0xff]
    %v528 = vld [vmem:[%s6 + $0x88] sm:$0xff]
    %v529 = vld [vmem:[%s6 + $0x90] sm:$0xff]
    %v530 = vld [vmem:[%s6 + $0x98] sm:$0xff]
    %532 = vset.pattern.permute.xlu0 0
    %533 = vperm.xlu0 %532, %v511
    %v534 = vpop.permute.xlu0 %533
    %537 = vset.pattern.permute.xlu0 0
    %538 = vperm.xlu0 %537, %v512
    %v539 = vpop.permute.xlu0 %538
    %542 = vset.pattern.permute.xlu0 0
    %543 = vperm.xlu0 %542, %v513
    %v544 = vpop.permute.xlu0 %543
    %547 = vset.pattern.permute.xlu0 0
    %548 = vperm.xlu0 %547, %v514
    %v549 = vpop.permute.xlu0 %548
    %552 = vset.pattern.permute.xlu0 0
    %553 = vperm.xlu0 %552, %v515
    %v554 = vpop.permute.xlu0 %553
    %557 = vset.pattern.permute.xlu0 0
    %558 = vperm.xlu0 %557, %v516
    %v559 = vpop.permute.xlu0 %558
    %562 = vset.pattern.permute.xlu0 0
    %563 = vperm.xlu0 %562, %v517
    %v564 = vpop.permute.xlu0 %563
    %567 = vset.pattern.permute.xlu0 0
    %568 = vperm.xlu0 %567, %v518
    %v569 = vpop.permute.xlu0 %568
    %572 = vset.pattern.permute.xlu0 0
    %573 = vperm.xlu0 %572, %v519
    %v574 = vpop.permute.xlu0 %573
    %577 = vset.pattern.permute.xlu0 0
    %578 = vperm.xlu0 %577, %v520
    %v579 = vpop.permute.xlu0 %578
    %582 = vset.pattern.permute.xlu0 0
    %583 = vperm.xlu0 %582, %v521
    %v584 = vpop.permute.xlu0 %583
    %587 = vset.pattern.permute.xlu0 0
    %588 = vperm.xlu0 %587, %v522
    %v589 = vpop.permute.xlu0 %588
    %592 = vset.pattern.permute.xlu0 0
    %593 = vperm.xlu0 %592, %v523
    %v594 = vpop.permute.xlu0 %593
    %597 = vset.pattern.permute.xlu0 0
    %598 = vperm.xlu0 %597, %v524
    %v599 = vpop.permute.xlu0 %598
    %602 = vset.pattern.permute.xlu0 0
    %603 = vperm.xlu0 %602, %v525
    %v604 = vpop.permute.xlu0 %603
    %607 = vset.pattern.permute.xlu0 0
    %608 = vperm.xlu0 %607, %v526
    %v609 = vpop.permute.xlu0 %608
    %612 = vset.pattern.permute.xlu0 0
    %613 = vperm.xlu0 %612, %v527
    %v614 = vpop.permute.xlu0 %613
    %617 = vset.pattern.permute.xlu0 0
    %618 = vperm.xlu0 %617, %v528
    %v619 = vpop.permute.xlu0 %618
    %622 = vset.pattern.permute.xlu0 0
    %623 = vperm.xlu0 %622, %v529
    %v624 = vpop.permute.xlu0 %623
    %627 = vset.pattern.permute.xlu0 0
    %628 = vperm.xlu0 %627, %v530
    %v629 = vpop.permute.xlu0 %628
    %vm631 = vcmask 654336
    %v633 = vsel %vm631, %v491, 0
    %v636 = vsel %vm631, %v492, 0
    %v639 = vsel %vm631, %v493, 0
    %v642 = vsel %vm631, %v494, 0
    %v645 = vsel %vm631, %v495, 0
    %v648 = vsel %vm631, %v496, 0
    %v651 = vsel %vm631, %v497, 0
    %v654 = vsel %vm631, %v498, 0
    %v657 = vsel %vm631, %v499, 0
    %v660 = vsel %vm631, %v500, 0
    %v663 = vsel %vm631, %v501, 0
    %v666 = vsel %vm631, %v502, 0
    %v669 = vsel %vm631, %v503, 0
    %v672 = vsel %vm631, %v504, 0
    %v675 = vsel %vm631, %v505, 0
    %v678 = vsel %vm631, %v506, 0
    %v681 = vsel %vm631, %v507, 0
    %v684 = vsel %vm631, %v508, 0
    %v687 = vsel %vm631, %v509, 0
    %v690 = vsel %vm631, %v510, 0
    %692 = vmatprep.subr.mxu0 0.0
    %693 = vmatpush1.msra.mxu0 0.0
    %694 = vmatprep.subr.mxu0 0.0
    %695 = vmatpush1.msra.mxu0 0.0
    %696 = vmatprep.subr.mxu0 0.0
    %697 = vmatpush1.msra.mxu0 0.0
    %698 = vmatprep.subr.mxu0 0.0
    %699 = vmatpush1.msra.mxu0 0.0
    %700 = vmatprep.subr.mxu0 0.0
    %701 = vmatpush1.msra.mxu0 0.0
    %702 = vmatprep.subr.mxu0 0.0
    %703 = vmatpush1.msra.mxu0 0.0
    %704 = vmatprep.subr.mxu0 0.0
    %705 = vmatpush1.msra.mxu0 %v490
    %706 = vmatprep.subr.mxu0 0.0
    %707 = vmatpush1.msra.mxu0 %v489
    %708 = vmatprep.subr.mxu0 0.0
    %709 = vmatpush1.msra.mxu0 %v488
    %710 = vmatprep.subr.mxu0 0.0
    %711 = vmatpush1.msra.mxu0 %v487
    %712 = vmatprep.subr.mxu0 0.0
    %713 = vmatpush1.msra.mxu0 %v486
    %714 = vmatprep.subr.mxu0 0.0
    %715 = vmatpush1.msra.mxu0 %v485
    %716 = vmatprep.subr.mxu0 0.0
    %717 = vmatpush1.msra.mxu0 %v484
    %718 = vmatprep.subr.mxu0 0.0
    %719 = vmatpush1.msra.mxu0 %v483
    %720 = vmatprep.subr.mxu0 0.0
    %721 = vmatpush1.msra.mxu0 %v482
    %722 = vmatprep.subr.mxu0 0.0
    %723 = vmatpush1.msra.mxu0 %v481
    %724 = vmatprep.subr.mxu0 0.0
    %725 = vmatpush2.msra.mxu0 0.0
    %726 = vmatprep.subr.mxu0 0.0
    %727 = vmatpush2.msra.mxu0 0.0
    %728 = vmatprep.subr.mxu0 0.0
    %729 = vmatpush2.msra.mxu0 0.0
    %730 = vmatprep.subr.mxu0 0.0
    %731 = vmatpush2.msra.mxu0 0.0
    %732 = vmatprep.subr.mxu0 0.0
    %733 = vmatpush2.msra.mxu0 0.0
    %734 = vmatprep.subr.mxu0 0.0
    %735 = vmatpush2.msra.mxu0 0.0
    %736 = vmatprep.subr.mxu0 0.0
    %737 = vmatpush2.msra.mxu0 0.0
    %738 = vmatprep.subr.mxu0 0.0
    %739 = vmatpush2.msra.mxu0 0.0
    %740 = vmatprep.subr.mxu0 0.0
    %741 = vmatpush2.msra.mxu0 0.0
    %742 = vmatprep.subr.mxu0 0.0
    %743 = vmatpush2.msra.mxu0 0.0
    %744 = vmatprep.subr.mxu0 0.0
    %745 = vmatpush2.msra.mxu0 0.0
    %746 = vmatprep.subr.mxu0 0.0
    %747 = vmatpush2.msra.mxu0 0.0
    %748 = vmatprep.subr.mxu0 0.0
    %749 = vmatpush2.msra.mxu0 0.0
    %750 = vmatprep.subr.mxu0 0.0
    %751 = vmatpush2.msra.mxu0 0.0
    %752 = vmatprep.subr.mxu0 0.0
    %753 = vmatpush2.msra.mxu0 0.0
    %754 = vmatprep.subr.mxu0 0.0
    %755 = vmatpush2.msra.mxu0 0.0
    %756 = vmatprep.mubr.f32.mxu0 0.0
    %757 = vmatmul.mubr.f32.gmra.mxu0 %v633
    %v758 = vpop.f32.mrf.mxu0
    %v759 = vadd.f32 %v534, %v758
    %v760 = vpop.f32.mrf.mxu0
    %761 = vmatprep.mubr.f32.mxu0 0.0
    %762 = vmatmul.mubr.f32.gmra.mxu0 %v636
    %v763 = vpop.f32.mrf.mxu0
    %v764 = vadd.f32 %v539, %v763
    %v765 = vpop.f32.mrf.mxu0
    %766 = vmatprep.mubr.f32.mxu0 0.0
    %767 = vmatmul.mubr.f32.gmra.mxu0 %v639
    %v768 = vpop.f32.mrf.mxu0
    %v769 = vadd.f32 %v544, %v768
    %v770 = vpop.f32.mrf.mxu0
    %771 = vmatprep.mubr.f32.mxu0 0.0
    %772 = vmatmul.mubr.f32.gmra.mxu0 %v642
    %v773 = vpop.f32.mrf.mxu0
    %v774 = vadd.f32 %v549, %v773
    %v775 = vpop.f32.mrf.mxu0
    %776 = vmatprep.mubr.f32.mxu0 0.0
    %777 = vmatmul.mubr.f32.gmra.mxu0 %v645
    %v778 = vpop.f32.mrf.mxu0
    %v779 = vadd.f32 %v554, %v778
    %v780 = vpop.f32.mrf.mxu0
    %781 = vmatprep.mubr.f32.mxu0 0.0
    %782 = vmatmul.mubr.f32.gmra.mxu0 %v648
    %v783 = vpop.f32.mrf.mxu0
    %v784 = vadd.f32 %v559, %v783
    %v785 = vpop.f32.mrf.mxu0
    %786 = vmatprep.mubr.f32.mxu0 0.0
    %787 = vmatmul.mubr.f32.gmra.mxu0 %v651
    %v788 = vpop.f32.mrf.mxu0
    %v789 = vadd.f32 %v564, %v788
    %v790 = vpop.f32.mrf.mxu0
    %791 = vmatprep.mubr.f32.mxu0 0.0
    %792 = vmatmul.mubr.f32.gmra.mxu0 %v654
    %v793 = vpop.f32.mrf.mxu0
    %v794 = vadd.f32 %v569, %v793
    %v795 = vpop.f32.mrf.mxu0
    %796 = vmatprep.mubr.f32.mxu0 0.0
    %797 = vmatmul.mubr.f32.gmra.mxu0 %v657
    %v798 = vpop.f32.mrf.mxu0
    %v799 = vadd.f32 %v574, %v798
    %v800 = vpop.f32.mrf.mxu0
    %801 = vmatprep.mubr.f32.mxu0 0.0
    %802 = vmatmul.mubr.f32.gmra.mxu0 %v660
    %v803 = vpop.f32.mrf.mxu0
    %v804 = vadd.f32 %v579, %v803
    %v805 = vpop.f32.mrf.mxu0
    %806 = vmatprep.mubr.f32.mxu0 0.0
    %807 = vmatmul.mubr.f32.gmra.mxu0 %v663
    %v808 = vpop.f32.mrf.mxu0
    %v809 = vadd.f32 %v584, %v808
    %v810 = vpop.f32.mrf.mxu0
    %811 = vmatprep.mubr.f32.mxu0 0.0
    %812 = vmatmul.mubr.f32.gmra.mxu0 %v666
    %v813 = vpop.f32.mrf.mxu0
    %v814 = vadd.f32 %v589, %v813
    %v815 = vpop.f32.mrf.mxu0
    %816 = vmatprep.mubr.f32.mxu0 0.0
    %817 = vmatmul.mubr.f32.gmra.mxu0 %v669
    %v818 = vpop.f32.mrf.mxu0
    %v819 = vadd.f32 %v594, %v818
    %v820 = vpop.f32.mrf.mxu0
    %821 = vmatprep.mubr.f32.mxu0 0.0
    %822 = vmatmul.mubr.f32.gmra.mxu0 %v672
    %v823 = vpop.f32.mrf.mxu0
    %v824 = vadd.f32 %v599, %v823
    %v825 = vpop.f32.mrf.mxu0
    %826 = vmatprep.mubr.f32.mxu0 0.0
    %827 = vmatmul.mubr.f32.gmra.mxu0 %v675
    %v828 = vpop.f32.mrf.mxu0
    %v829 = vadd.f32 %v604, %v828
    %v830 = vpop.f32.mrf.mxu0
    %831 = vmatprep.mubr.f32.mxu0 0.0
    %832 = vmatmul.mubr.f32.gmra.mxu0 %v678
    %v833 = vpop.f32.mrf.mxu0
    %v834 = vadd.f32 %v609, %v833
    %v835 = vpop.f32.mrf.mxu0
    %836 = vmatprep.mubr.f32.mxu0 0.0
    %837 = vmatmul.mubr.f32.gmra.mxu0 %v681
    %v838 = vpop.f32.mrf.mxu0
    %v839 = vadd.f32 %v614, %v838
    %v840 = vpop.f32.mrf.mxu0
    %841 = vmatprep.mubr.f32.mxu0 0.0
    %842 = vmatmul.mubr.f32.gmra.mxu0 %v684
    %v843 = vpop.f32.mrf.mxu0
    %v844 = vadd.f32 %v619, %v843
    %v845 = vpop.f32.mrf.mxu0
    %846 = vmatprep.mubr.f32.mxu0 0.0
    %847 = vmatmul.mubr.f32.gmra.mxu0 %v687
    %v848 = vpop.f32.mrf.mxu0
    %v849 = vadd.f32 %v624, %v848
    %v850 = vpop.f32.mrf.mxu0
    %851 = vmatprep.mubr.f32.mxu0 0.0
    %852 = vmatmul.mubr.f32.gmra.mxu0 %v690
    %v853 = vpop.f32.mrf.mxu0
    %v854 = vadd.f32 %v629, %v853
    %v855 = vpop.f32.mrf.mxu0
    %856 = vdwg.mxu0
    %v857 = vmax.f32 %v759, 0.0
    %v858 = vmax.f32 %v764, 0.0
    %v859 = vmax.f32 %v769, 0.0
    %v860 = vmax.f32 %v774, 0.0
    %v861 = vmax.f32 %v779, 0.0
    %v862 = vmax.f32 %v784, 0.0
    %v863 = vmax.f32 %v789, 0.0
    %v864 = vmax.f32 %v794, 0.0
    %v865 = vmax.f32 %v799, 0.0
    %v866 = vmax.f32 %v804, 0.0
    %v867 = vmax.f32 %v809, 0.0
    %v868 = vmax.f32 %v814, 0.0
    %v869 = vmax.f32 %v819, 0.0
    %v870 = vmax.f32 %v824, 0.0
    %v871 = vmax.f32 %v829, 0.0
    %v872 = vmax.f32 %v834, 0.0
    %v873 = vmax.f32 %v839, 0.0
    %v874 = vmax.f32 %v844, 0.0
    %v875 = vmax.f32 %v849, 0.0
    %v876 = vmax.f32 %v854, 0.0
    %v877 = vld [vmem:[%s7] sm:$0xff]
    %v878 = vld [vmem:[%s7 + $0x8] sm:$0xff]
    %v879 = vld [vmem:[%s7 + $0x10] sm:$0xff]
    %v880 = vld [vmem:[%s7 + $0x18] sm:$0xff]
    %v881 = vld [vmem:[%s7 + $0x20] sm:$0xff]
    %v882 = vld [vmem:[%s7 + $0x28] sm:$0xff]
    %v883 = vld [vmem:[%s7 + $0x30] sm:$0xff]
    %v884 = vld [vmem:[%s7 + $0x38] sm:$0xff]
    %v885 = vld [vmem:[%s7 + $0x40] sm:$0xff]
    %v886 = vld [vmem:[%s7 + $0x48] sm:$0xff]
    %v887 = vld [vmem:[%s7 + $0x50] sm:$0xff]
    %v888 = vld [vmem:[%s7 + $0x58] sm:$0xff]
    %v889 = vld [vmem:[%s7 + $0x60] sm:$0xff]
    %v890 = vld [vmem:[%s7 + $0x68] sm:$0xff]
    %v891 = vld [vmem:[%s7 + $0x70] sm:$0xff]
    %v892 = vld [vmem:[%s7 + $0x78] sm:$0xff]
    %v893 = vld [vmem:[%s7 + $0x80] sm:$0xff]
    %v894 = vld [vmem:[%s7 + $0x88] sm:$0xff]
    %v895 = vld [vmem:[%s7 + $0x90] sm:$0xff]
    %v896 = vld [vmem:[%s7 + $0x98] sm:$0xff]
    %v897 = vld [vmem:[%s8] sm:$0xff]
    %v898 = vld [vmem:[%s8 + $0x8] sm:$0xff]
    %v899 = vld [vmem:[%s8 + $0x10] sm:$0xff]
    %v900 = vld [vmem:[%s8 + $0x18] sm:$0xff]
    %v901 = vld [vmem:[%s8 + $0x20] sm:$0xff]
    %v902 = vld [vmem:[%s8 + $0x28] sm:$0xff]
    %v903 = vld [vmem:[%s8 + $0x30] sm:$0xff]
    %v904 = vld [vmem:[%s8 + $0x38] sm:$0xff]
    %v905 = vld [vmem:[%s8 + $0x40] sm:$0xff]
    %v906 = vld [vmem:[%s8 + $0x48] sm:$0xff]
    %908 = vset.pattern.permute.xlu0 0
    %909 = vperm.xlu0 %908, %v897
    %v910 = vpop.permute.xlu0 %909
    %913 = vset.pattern.permute.xlu0 0
    %914 = vperm.xlu0 %913, %v898
    %v915 = vpop.permute.xlu0 %914
    %918 = vset.pattern.permute.xlu0 0
    %919 = vperm.xlu0 %918, %v899
    %v920 = vpop.permute.xlu0 %919
    %923 = vset.pattern.permute.xlu0 0
    %924 = vperm.xlu0 %923, %v900
    %v925 = vpop.permute.xlu0 %924
    %928 = vset.pattern.permute.xlu0 0
    %929 = vperm.xlu0 %928, %v901
    %v930 = vpop.permute.xlu0 %929
    %933 = vset.pattern.permute.xlu0 0
    %934 = vperm.xlu0 %933, %v902
    %v935 = vpop.permute.xlu0 %934
    %938 = vset.pattern.permute.xlu0 0
    %939 = vperm.xlu0 %938, %v903
    %v940 = vpop.permute.xlu0 %939
    %943 = vset.pattern.permute.xlu0 0
    %944 = vperm.xlu0 %943, %v904
    %v945 = vpop.permute.xlu0 %944
    %948 = vset.pattern.permute.xlu0 0
    %949 = vperm.xlu0 %948, %v905
    %v950 = vpop.permute.xlu0 %949
    %953 = vset.pattern.permute.xlu0 0
    %954 = vperm.xlu0 %953, %v906
    %v955 = vpop.permute.xlu0 %954
    %vm957 = vcmask 261120
    %v959 = vsel %vm957, %v878, 0
    %v962 = vsel %vm957, %v880, 0
    %v965 = vsel %vm957, %v882, 0
    %v968 = vsel %vm957, %v884, 0
    %v971 = vsel %vm957, %v886, 0
    %v974 = vsel %vm957, %v888, 0
    %v977 = vsel %vm957, %v890, 0
    %v980 = vsel %vm957, %v892, 0
    %v983 = vsel %vm957, %v894, 0
    %v986 = vsel %vm957, %v896, 0
    %988 = vmatprep.subr.mxu0 0.0
    %989 = vmatpush1.msra.mxu0 %v872
    %990 = vmatprep.subr.mxu0 0.0
    %991 = vmatpush1.msra.mxu0 %v871
    %992 = vmatprep.subr.mxu0 0.0
    %993 = vmatpush1.msra.mxu0 %v870
    %994 = vmatprep.subr.mxu0 0.0
    %995 = vmatpush1.msra.mxu0 %v869
    %996 = vmatprep.subr.mxu0 0.0
    %997 = vmatpush1.msra.mxu0 %v868
    %998 = vmatprep.subr.mxu0 0.0
    %999 = vmatpush1.msra.mxu0 %v867
    %1000 = vmatprep.subr.mxu0 0.0
    %1001 = vmatpush1.msra.mxu0 %v866
    %1002 = vmatprep.subr.mxu0 0.0
    %1003 = vmatpush1.msra.mxu0 %v865
    %1004 = vmatprep.subr.mxu0 0.0
    %1005 = vmatpush1.msra.mxu0 %v864
    %1006 = vmatprep.subr.mxu0 0.0
    %1007 = vmatpush1.msra.mxu0 %v863
    %1008 = vmatprep.subr.mxu0 0.0
    %1009 = vmatpush1.msra.mxu0 %v862
    %1010 = vmatprep.subr.mxu0 0.0
    %1011 = vmatpush1.msra.mxu0 %v861
    %1012 = vmatprep.subr.mxu0 0.0
    %1013 = vmatpush1.msra.mxu0 %v860
    %1014 = vmatprep.subr.mxu0 0.0
    %1015 = vmatpush1.msra.mxu0 %v859
    %1016 = vmatprep.subr.mxu0 0.0
    %1017 = vmatpush1.msra.mxu0 %v858
    %1018 = vmatprep.subr.mxu0 0.0
    %1019 = vmatpush1.msra.mxu0 %v857
    %1020 = vmatprep.subr.mxu0 0.0
    %1021 = vmatpush2.msra.mxu0 0.0
    %1022 = vmatprep.subr.mxu0 0.0
    %1023 = vmatpush2.msra.mxu0 0.0
    %1024 = vmatprep.subr.mxu0 0.0
    %1025 = vmatpush2.msra.mxu0 0.0
    %1026 = vmatprep.subr.mxu0 0.0
    %1027 = vmatpush2.msra.mxu0 0.0
    %1028 = vmatprep.subr.mxu0 0.0
    %1029 = vmatpush2.msra.mxu0 0.0
    %1030 = vmatprep.subr.mxu0 0.0
    %1031 = vmatpush2.msra.mxu0 0.0
    %1032 = vmatprep.subr.mxu0 0.0
    %1033 = vmatpush2.msra.mxu0 0.0
    %1034 = vmatprep.subr.mxu0 0.0
    %1035 = vmatpush2.msra.mxu0 0.0
    %1036 = vmatprep.subr.mxu0 0.0
    %1037 = vmatpush2.msra.mxu0 0.0
    %1038 = vmatprep.subr.mxu0 0.0
    %1039 = vmatpush2.msra.mxu0 0.0
    %1040 = vmatprep.subr.mxu0 0.0
    %1041 = vmatpush2.msra.mxu0 0.0
    %1042 = vmatprep.subr.mxu0 0.0
    %1043 = vmatpush2.msra.mxu0 0.0
    %1044 = vmatprep.subr.mxu0 0.0
    %1045 = vmatpush2.msra.mxu0 %v876
    %1046 = vmatprep.subr.mxu0 0.0
    %1047 = vmatpush2.msra.mxu0 %v875
    %1048 = vmatprep.subr.mxu0 0.0
    %1049 = vmatpush2.msra.mxu0 %v874
    %1050 = vmatprep.subr.mxu0 0.0
    %1051 = vmatpush2.msra.mxu0 %v873
    %1052 = vmatprep.mubr.f32.mxu0 %v959
    %1053 = vmatmul.mubr.f32.gmra.mxu0 %v877
    %v1054 = vpop.f32.mrf.mxu0
    %v1055 = vadd.f32 %v910, %v1054
    %v1056 = vpop.f32.mrf.mxu0
    %1057 = vmatprep.mubr.f32.mxu0 %v962
    %1058 = vmatmul.mubr.f32.gmra.mxu0 %v879
    %v1059 = vpop.f32.mrf.mxu0
    %v1060 = vadd.f32 %v915, %v1059
    %v1061 = vpop.f32.mrf.mxu0
    %1062 = vmatprep.mubr.f32.mxu0 %v965
    %1063 = vmatmul.mubr.f32.gmra.mxu0 %v881
    %v1064 = vpop.f32.mrf.mxu0
    %v1065 = vadd.f32 %v920, %v1064
    %v1066 = vpop.f32.mrf.mxu0
    %1067 = vmatprep.mubr.f32.mxu0 %v968
    %1068 = vmatmul.mubr.f32.gmra.mxu0 %v883
    %v1069 = vpop.f32.mrf.mxu0
    %v1070 = vadd.f32 %v925, %v1069
    %v1071 = vpop.f32.mrf.mxu0
    %1072 = vmatprep.mubr.f32.mxu0 %v971
    %1073 = vmatmul.mubr.f32.gmra.mxu0 %v885
    %v1074 = vpop.f32.mrf.mxu0
    %v1075 = vadd.f32 %v930, %v1074
    %v1076 = vpop.f32.mrf.mxu0
    %1077 = vmatprep.mubr.f32.mxu0 %v974
    %1078 = vmatmul.mubr.f32.gmra.mxu0 %v887
    %v1079 = vpop.f32.mrf.mxu0
    %v1080 = vadd.f32 %v935, %v1079
    %v1081 = vpop.f32.mrf.mxu0
    %1082 = vmatprep.mubr.f32.mxu0 %v977
    %1083 = vmatmul.mubr.f32.gmra.mxu0 %v889
    %v1084 = vpop.f32.mrf.mxu0
    %v1085 = vadd.f32 %v940, %v1084
    %v1086 = vpop.f32.mrf.mxu0
    %1087 = vmatprep.mubr.f32.mxu0 %v980
    %1088 = vmatmul.mubr.f32.gmra.mxu0 %v891
    %v1089 = vpop.f32.mrf.mxu0
    %v1090 = vadd.f32 %v945, %v1089
    %v1091 = vpop.f32.mrf.mxu0
    %1092 = vmatprep.mubr.f32.mxu0 %v983
    %1093 = vmatmul.mubr.f32.gmra.mxu0 %v893
    %v1094 = vpop.f32.mrf.mxu0
    %v1095 = vadd.f32 %v950, %v1094
    %v1096 = vpop.f32.mrf.mxu0
    %1097 = vmatprep.mubr.f32.mxu0 %v986
    %1098 = vmatmul.mubr.f32.gmra.mxu0 %v895
    %v1099 = vpop.f32.mrf.mxu0
    %v1100 = vadd.f32 %v955, %v1099
    %v1101 = vpop.f32.mrf.mxu0
    %1102 = vdwg.mxu0
    %v1103 = vmax.f32 %v1055, 0.0
    %v1104 = vmax.f32 %v1060, 0.0
    %v1105 = vmax.f32 %v1065, 0.0
    %v1106 = vmax.f32 %v1070, 0.0
    %v1107 = vmax.f32 %v1075, 0.0
    %v1108 = vmax.f32 %v1080, 0.0
    %v1109 = vmax.f32 %v1085, 0.0
    %v1110 = vmax.f32 %v1090, 0.0
    %v1111 = vmax.f32 %v1095, 0.0
    %v1112 = vmax.f32 %v1100, 0.0
    %v1113 = vld [vmem:[%s9] sm:$0x3]
    %v1114 = vld [vmem:[%s10] sm:$0x3]
    %1116 = vset.pattern.permute.xlu0 0
    %1117 = vperm.xlu0 %1116, %v1114
    %v1118 = vpop.permute.xlu0 %1117
    %v1121 = vsel %vm631, %v1113, 0
    %1123 = vmatprep.subr.mxu0 0.0
    %1124 = vmatpush1.msra.mxu0 0.0
    %1125 = vmatprep.subr.mxu0 0.0
    %1126 = vmatpush1.msra.mxu0 0.0
    %1127 = vmatprep.subr.mxu0 0.0
    %1128 = vmatpush1.msra.mxu0 0.0
    %1129 = vmatprep.subr.mxu0 0.0
    %1130 = vmatpush1.msra.mxu0 0.0
    %1131 = vmatprep.subr.mxu0 0.0
    %1132 = vmatpush1.msra.mxu0 0.0
    %1133 = vmatprep.subr.mxu0 0.0
    %1134 = vmatpush1.msra.mxu0 0.0
    %1135 = vmatprep.subr.mxu0 0.0
    %1136 = vmatpush1.msra.mxu0 %v1112
    %1137 = vmatprep.subr.mxu0 0.0
    %1138 = vmatpush1.msra.mxu0 %v1111
    %1139 = vmatprep.subr.mxu0 0.0
    %1140 = vmatpush1.msra.mxu0 %v1110
    %1141 = vmatprep.subr.mxu0 0.0
    %1142 = vmatpush1.msra.mxu0 %v1109
    %1143 = vmatprep.subr.mxu0 0.0
    %1144 = vmatpush1.msra.mxu0 %v1108
    %1145 = vmatprep.subr.mxu0 0.0
    %1146 = vmatpush1.msra.mxu0 %v1107
    %1147 = vmatprep.subr.mxu0 0.0
    %1148 = vmatpush1.msra.mxu0 %v1106
    %1149 = vmatprep.subr.mxu0 0.0
    %1150 = vmatpush1.msra.mxu0 %v1105
    %1151 = vmatprep.subr.mxu0 0.0
    %1152 = vmatpush1.msra.mxu0 %v1104
    %1153 = vmatprep.subr.mxu0 0.0
    %1154 = vmatpush1.msra.mxu0 %v1103
    %1155 = vmatprep.subr.mxu0 0.0
    %1156 = vmatpush2.msra.mxu0 0.0
    %1157 = vmatprep.subr.mxu0 0.0
    %1158 = vmatpush2.msra.mxu0 0.0
    %1159 = vmatprep.subr.mxu0 0.0
    %1160 = vmatpush2.msra.mxu0 0.0
    %1161 = vmatprep.subr.mxu0 0.0
    %1162 = vmatpush2.msra.mxu0 0.0
    %1163 = vmatprep.subr.mxu0 0.0
    %1164 = vmatpush2.msra.mxu0 0.0
    %1165 = vmatprep.subr.mxu0 0.0
    %1166 = vmatpush2.msra.mxu0 0.0
    %1167 = vmatprep.subr.mxu0 0.0
    %1168 = vmatpush2.msra.mxu0 0.0
    %1169 = vmatprep.subr.mxu0 0.0
    %1170 = vmatpush2.msra.mxu0 0.0
    %1171 = vmatprep.subr.mxu0 0.0
    %1172 = vmatpush2.msra.mxu0 0.0
    %1173 = vmatprep.subr.mxu0 0.0
    %1174 = vmatpush2.msra.mxu0 0.0
    %1175 = vmatprep.subr.mxu0 0.0
    %1176 = vmatpush2.msra.mxu0 0.0
    %1177 = vmatprep.subr.mxu0 0.0
    %1178 = vmatpush2.msra.mxu0 0.0
    %1179 = vmatprep.subr.mxu0 0.0
    %1180 = vmatpush2.msra.mxu0 0.0
    %1181 = vmatprep.subr.mxu0 0.0
    %1182 = vmatpush2.msra.mxu0 0.0
    %1183 = vmatprep.subr.mxu0 0.0
    %1184 = vmatpush2.msra.mxu0 0.0
    %1185 = vmatprep.subr.mxu0 0.0
    %1186 = vmatpush2.msra.mxu0 0.0
    %1187 = vmatprep.mubr.f32.mxu0 0.0
    %1188 = vmatmul.mubr.f32.gmra.mxu0 %v1121
    %v1189 = vpop.f32.mrf.mxu0
    %v1190 = vadd.f32 %v1118, %v1189
    %v1191 = vpop.f32.mrf.mxu0
    %1192 = vdwg.mxu0
    %v1193 = vmax.f32 %v1190, 0.0
    %v1194 = vand.u32 2147483647, %v1190
    %v1195 = vsub.f32 0.0, %v1194
    %v1196 = vmul.f32 %v1195, 1.442695
    %v1197 = vpow.pop %v1196
    %v1198 = vadd.f32 %v1197, 1.0
    %v1199 = vlog2.pop %v1198
    %v1200 = vmul.f32 %v1199, 0.6931472
    %v1201 = vmul.f32 -0.5, %v1197
    %v1202 = vadd.f32 %v1201, 1.0
    %v1203 = vmul.f32 %v1202, %v1197
    %v1204 = vand.u32 2147483647, %v1197
    %vm1205 = vcmp.lt.f32.partialorder %v1204, 0.0004427343
    %v1206 = vsel %vm1205, %v1203, %v1200
    %v1207 = vadd.f32 %v1193, %v1206
    %1208 = vst [vmem:[#allocation2] sm:$0x3] %v1207
    // Predicated region
    $region46: #{comparison_fc_large.1} parent=1 // pred_check
      _
    $region47: #{comparison_fc_large.1} parent=1 // pred_check_branch
      %1210 = sbr.rel (0) target = $region49
    $region48: #{comparison_fc_large.1} parent=1 // pred_region
      %s1212 = ssub.s32 32, 32
      %1213 = vsyncadd [#allocation3], %s1212
      %s1215 = sshll.u32 [#allocation2], 4
      %s1216 = int_to_ptr.vmem [resolvable:$true] %s1215
      %1218 = dma.vmem_to_hbm [thread:$0]  %s1216, 32, %s11, [#allocation3]
    $region49: #{comparison_fc_large.1} parent=1 // pred_fallthru
      _
    // Predicated region
    $region50: #{comparison_fc_large.1} parent=1 // pred_check
      _
    $region51: #{comparison_fc_large.1} parent=1 // pred_check_branch
      %1220 = sbr.rel (0) target = $region53
    $region52: #{comparison_fc_large.1} parent=1 // pred_region
      %1221 = dma.done [#allocation3], 32
    $region53: #{comparison_fc_large.1} parent=1 // pred_fallthru
      _
    %1222 = vsyncpa [#allocation3], 1

</llo_original>
